<compile_context>
chip_gen: v7x
topology: tpu7x:2x2x1
jax: 0.10.0
libtpu: 0.0.40
codegen_flags: <defaults>
</compile_context>

<pallas_src>
import jax
import jax.numpy as jnp
import numpy as np
from jax import lax
from jax.experimental import pallas as pl
from jax.experimental.pallas import tpu as pltpu


# ----------------------------------------------------------------------------
# Generation-aware VMEM budget (v5e/v6e: 128 MiB physical, v7x: 64 MiB per TC)
# ----------------------------------------------------------------------------
def _default_vmem_limit():
    cap = None
    try:
        cap = getattr(pltpu.get_tpu_info(), "vmem_capacity_bytes", None)
    except Exception:
        cap = None
    if not cap:
        cap = 64 * 1024 * 1024
    return int(max(32 * 1024 * 1024, min(cap * 3 // 4, 96 * 1024 * 1024)))


_VMEM_LIMIT = _default_vmem_limit()
_TILE_BUDGET_BYTES = _VMEM_LIMIT // 3     # headroom for double buffers + weights


def _silu(y):
    # y * sigmoid(y); approx reciprocal lands on the EUP slot.  Deliberate
    # (documented) numerical deviation from exact SiLU, covered by the test tol.
    return y * pl.reciprocal(1.0 + jnp.exp(-y), approx=True)


# ----------------------------------------------------------------------------
# Feature probe: unaligned minor-dim concatenate inside a kernel.  Used to pick
# the K-folded single-matmul paths; falls back to per-tap / per-chunk
# accumulation if the current Mosaic build rejects it.
# ----------------------------------------------------------------------------
_FUSE_K_OK = None


def _probe_kernel(x_ref, w_ref, o_ref):
    cols = jnp.concatenate([x_ref[...]] * 9, axis=-1)        # (16, 27) bf16
    o_ref[...] = jnp.dot(cols, w_ref[...], preferred_element_type=jnp.float32)


def _fuse_k_supported():
    global _FUSE_K_OK
    if _FUSE_K_OK is None:
        try:
            out = pl.pallas_call(
                _probe_kernel,
                out_shape=jax.ShapeDtypeStruct((16, 8), jnp.float32),
            )(jnp.ones((16, 3), jnp.bfloat16), jnp.ones((27, 8), jnp.bfloat16))
            jax.block_until_ready(out)
            _FUSE_K_OK = True
        except Exception:
            _FUSE_K_OK = False
    return _FUSE_K_OK


# ----------------------------------------------------------------------------
# Tile selection: prefer an exact divisor (no pad / no slice HBM round trips)
# ----------------------------------------------------------------------------
def _choose_tile(total, limit, align):
    """Returns (tile, padded_total). Prefers a tile in (limit/2, limit] that
    divides `total`; otherwise falls back to `limit` with padding."""
    limit = max(align, min(limit, total))
    limit = max(align, (limit // align) * align)
    min_t = max(align, (limit // 2 // align) * align)
    t = limit
    while t >= min_t:
        if total % t == 0:
            return t, total
        t -= align
    padded = -(-total // limit) * limit
    return limit, padded


# ----------------------------------------------------------------------------
# Fused 1x1 conv (+ on-the-fly channel concat) + folded BN bias + SiLU
# ----------------------------------------------------------------------------
def _make_pointwise_kernel(chunk_widths, fuse_k):
    n_chunks = len(chunk_widths)

    def kernel(*refs):
        chunk_refs = refs[:n_chunks]
        w_ref, bias_ref, o_ref = refs[n_chunks:n_chunks + 3]
        if n_chunks == 1:
            y = jnp.dot(chunk_refs[0][...], w_ref[...],
                        preferred_element_type=jnp.float32)
        elif fuse_k:
            # Concat the chunk tiles in VMEM -> ONE wide-K matmul (better MXU
            # contraction depth on v6e/v7x, one f32 accumulate).
            x = jnp.concatenate([r[...] for r in chunk_refs], axis=-1)
            y = jnp.dot(x, w_ref[...], preferred_element_type=jnp.float32)
        else:
            y = None
            off = 0
            for r, ci in zip(chunk_refs, chunk_widths):
                d = jnp.dot(r[...], w_ref[off:off + ci, :],
                            preferred_element_type=jnp.float32)
                y = d if y is None else y + d
                off += ci
        y = y + bias_ref[...]                     # folded BatchNorm (eval mode)
        o_ref[...] = _silu(y).astype(o_ref.dtype)

    return kernel


def fused_pointwise_conv(chunks, w_kio, bias, out_dtype, block_rows=None):
    """chunks: list of (M, Ci) arrays; w_kio: (sum Ci, Cout) with BN scale
    already folded in; bias: (Cout,)."""
    M = chunks[0].shape[0]
    Ktot, Cout = w_kio.shape
    chunk_widths = tuple(int(ch.shape[1]) for ch in chunks)
    assert sum(chunk_widths) == Ktot

    if block_rows is None:
        per_row = Ktot * 2 * 2 + Ktot * 2 + Cout * (4 + 2 * 2)
        block_rows = _TILE_BUDGET_BYTES // max(per_row, 1)
        block_rows = min(block_rows, 4096, max(16, -(-M // 8)))  # keep >=8 tiles
    TM, Mp = _choose_tile(M, max(16, block_rows), 16)
    n_tiles = Mp // TM

    if Mp != M:
        # TODO(synk): handle the ragged last tile with an in-kernel masked store
        #             instead of this pad + slice round trip.
        chunks = [jnp.pad(ch.astype(jnp.bfloat16), ((0, Mp - M), (0, 0)))
                  for ch in chunks]
    else:
        chunks = [ch.astype(jnp.bfloat16) for ch in chunks]
    w_b = w_kio.astype(jnp.bfloat16)
    bias2 = bias.reshape(1, Cout).astype(jnp.float32)

    in_specs = [pl.BlockSpec((TM, ci), lambda i: (i, 0)) for ci in chunk_widths]
    in_specs += [
        pl.BlockSpec((Ktot, Cout), lambda i: (0, 0)),   # weights stay VMEM-resident
        pl.BlockSpec((1, Cout), lambda i: (0, 0)),
    ]

    out = pl.pallas_call(
        _make_pointwise_kernel(chunk_widths, _fuse_k_supported()),
        out_shape=jax.ShapeDtypeStruct((Mp, Cout), out_dtype),
        grid_spec=pltpu.PrefetchScalarGridSpec(
            num_scalar_prefetch=0,
            grid=(n_tiles,),
            in_specs=in_specs,
            out_specs=pl.BlockSpec((TM, Cout), lambda i: (i, 0)),
        ),
        compiler_params=pltpu.CompilerParams(
            dimension_semantics=("parallel",),
            vmem_limit_bytes=_VMEM_LIMIT,
        ),
    )(*chunks, w_b, bias2)
    return out if Mp == M else out[:M]


def conv1x1(x_nhwc, w_oihw, bias, out_dtype=jnp.bfloat16, block_rows=None):
    N, H, W, Cin = x_nhwc.shape
    Cout = w_oihw.shape[0]
    xf = x_nhwc.reshape(N * H * W, Cin)
    wf = jnp.transpose(w_oihw[:, :, 0, 0], (1, 0))            # (Cin, Cout)
    out = fused_pointwise_conv([xf], wf, bias, out_dtype, block_rows)
    return out.reshape(N, H, W, Cout)


def conv1x1_concat(chunks_nhwc, w_oihw, bias, out_dtype=jnp.float32,
                   block_rows=None):
    """1x1 conv over the channel-concat of `chunks_nhwc`, concat done in VMEM."""
    N, H, W, _ = chunks_nhwc[0].shape
    Cout = w_oihw.shape[0]
    flat = [ch.reshape(N * H * W, ch.shape[-1]) for ch in chunks_nhwc]
    wf = jnp.transpose(w_oihw[:, :, 0, 0], (1, 0))            # (sum Ci, Cout)
    out = fused_pointwise_conv(flat, wf, bias, out_dtype, block_rows)
    return out.reshape(N, H, W, Cout)


# ----------------------------------------------------------------------------
# Fused 3x3 conv ('same', stride 1) + folded BN bias + SiLU (+ optional residual)
# Double-buffered halo DMA from HBM, taps folded into matmul K when supported.
# ----------------------------------------------------------------------------
def _make_conv3x3_kernel(TH, W, Cin, with_residual, fuse_k):
    def kernel(*refs):
        if with_residual:
            x_hbm, w_ref, bias_ref, res_ref, o_ref, halo_ref, dma_sem = refs
        else:
            x_hbm, w_ref, bias_ref, o_ref, halo_ref, dma_sem = refs
            res_ref = None
        n = pl.program_id(0)
        i = pl.program_id(1)
        n_row_tiles = pl.num_programs(1)

        def start_fetch(row_tile_idx, slot):
            pltpu.make_async_copy(
                x_hbm.at[n, pl.ds(row_tile_idx * TH, TH + 2)],
                halo_ref.at[slot], dma_sem.at[slot]).start()

        # Prime the pipeline on the first row tile of each image; for i>0 the
        # current tile's halo was already prefetched by the previous grid step.
        @pl.when(i == 0)
        def _():
            start_fetch(0, 0)

        # Prefetch the NEXT row tile (same image) before waiting on the current
        # one so the HBM fetch overlaps this step's compute.
        @pl.when(i + 1 < n_row_tiles)
        def _():
            start_fetch(i + 1, (i + 1) % 2)

        slot = i % 2
        pltpu.make_async_copy(
            x_hbm.at[n, pl.ds(i * TH, TH + 2)],
            halo_ref.at[slot], dma_sem.at[slot]).wait()

        hv = halo_ref[slot]                               # (TH+2, W+2, Cin) bf16
        taps = [hv[dy:dy + TH, dx:dx + W, :].reshape(TH * W, Cin)
                for dy in range(3) for dx in range(3)]
        if fuse_k:
            # In-VMEM im2col: ONE matmul with K = 9*Cin, one f32 accumulate.
            cols = jnp.concatenate(taps, axis=-1)         # (TH*W, 9*Cin)
            y = jnp.dot(cols, w_ref[...], preferred_element_type=jnp.float32)
        else:
            y = None
            for t in range(9):
                d = jnp.dot(taps[t], w_ref[t], preferred_element_type=jnp.float32)
                y = d if y is None else y + d
        y = _silu(y + bias_ref[...]).reshape(TH, W, -1)   # folded BN + SiLU
        if with_residual:                                 # Bottleneck shortcut
            y = y + res_ref[0].astype(jnp.float32)
        o_ref[0] = y.astype(o_ref.dtype)

    return kernel


def conv3x3(x_nhwc, w_oihw, bias, out_dtype=jnp.bfloat16, row_tile=None,
            residual=None):
    N, H, W, Cin = x_nhwc.shape
    Cout = w_oihw.shape[0]

    if row_tile is None:
        per_row = ((W + 2) * Cin * 2 * 2        # double-buffered halo (bf16)
                   + W * 9 * Cin * 2            # in-VMEM im2col tile
                   + W * Cout * (4 + 2 * 2))    # f32 epilogue + dbuf output
        row_tile = _TILE_BUDGET_BYTES // max(per_row, 1)
        row_tile = min(max(1, row_tile), max(1, H // 4))  # keep grid fed (v7x)
    TH, Hp = _choose_tile(H, max(1, row_tile), 1)
    HT = Hp // TH
    fuse_k = _fuse_k_supported()

    # Halo pad (+1 each side in H/W) and, only in the rare non-dividing case,
    # round H up to a multiple of TH.
    xp = jnp.pad(x_nhwc.astype(jnp.bfloat16),
                 ((0, 0), (1, 1 + (Hp - H)), (1, 1), (0, 0)))  # (N, Hp+2, W+2, Cin)

    w_hwio = jnp.transpose(w_oihw, (2, 3, 1, 0))                # (3,3,Cin,Cout)
    if fuse_k:
        w_k = w_hwio.reshape(9 * Cin, Cout).astype(jnp.bfloat16)
        w_spec = pl.BlockSpec((9 * Cin, Cout), lambda nn, ii: (0, 0))
    else:
        w_k = w_hwio.reshape(9, Cin, Cout).astype(jnp.bfloat16)
        w_spec = pl.BlockSpec((9, Cin, Cout), lambda nn, ii: (0, 0, 0))
    bias2 = bias.reshape(1, Cout).astype(jnp.float32)

    with_res = residual is not None
    inputs = [xp, w_k, bias2]
    in_specs = [
        pl.BlockSpec(memory_space=pl.ANY),      # activations stay in HBM (manual DMA)
        w_spec,
        pl.BlockSpec((1, Cout), lambda nn, ii: (0, 0)),
    ]
    if with_res:
        res = residual.astype(jnp.bfloat16)
        if Hp != H:
            res = jnp.pad(res, ((0, 0), (0, Hp - H), (0, 0), (0, 0)))
        inputs.append(res)
        in_specs.append(pl.BlockSpec((1, TH, W, Cout), lambda nn, ii: (nn, ii, 0, 0)))

    out = pl.pallas_call(
        _make_conv3x3_kernel(TH, W, Cin, with_res, fuse_k),
        out_shape=jax.ShapeDtypeStruct((N, Hp, W, Cout), out_dtype),
        grid_spec=pltpu.PrefetchScalarGridSpec(
            num_scalar_prefetch=0,
            grid=(N, HT),
            in_specs=in_specs,
            out_specs=pl.BlockSpec((1, TH, W, Cout), lambda nn, ii: (nn, ii, 0, 0)),
            scratch_shapes=[
                pltpu.VMEM((2, TH + 2, W + 2, Cin), jnp.bfloat16),  # halo dbl-buffer
                pltpu.SemaphoreType.DMA((2,)),
            ],
        ),
        compiler_params=pltpu.CompilerParams(
            # batch axis parallel (megacore); row-tile axis arbitrary so the
            # cross-step halo prefetch order is guaranteed.
            dimension_semantics=("parallel", "arbitrary"),
            vmem_limit_bytes=_VMEM_LIMIT,
        ),
    )(*inputs)
    return out if Hp == H else out[:, :H]


# ----------------------------------------------------------------------------
# C2f forward (Pallas path)
# ----------------------------------------------------------------------------
def _fold_bn(p):
    """Fold the BN scale into the conv weight (per output channel)."""
    w = p['w'] * p['scale'][:, None, None, None]
    return w, p['bias']


def c2f_forward(x_nchw, params, n=1, shortcut=False, block_rows=None,
                row_tile=None):
    x = jnp.transpose(x_nchw, (0, 2, 3, 1))               # NCHW -> NHWC
    c = params['c']
    w, b = _fold_bn(params['cv1'])
    y = conv1x1(x, w, b, block_rows=block_rows)           # (N,H,W,2c) bf16
    chunks = [y]                        # covers both halves of the channel chunk(2)
    cur = y[..., c:]
    for i in range(n):
        blk = params['m'][i]
        w1, b1 = _fold_bn(blk['cv1'])
        w2, b2 = _fold_bn(blk['cv2'])
        h = conv3x3(cur, w1, b1, row_tile=row_tile)
        cur = conv3x3(h, w2, b2, row_tile=row_tile,
                      residual=cur if shortcut else None)  # fused shortcut add
        chunks.append(cur)
    w, b = _fold_bn(params['cv2'])
    out = conv1x1_concat(chunks, w, b, out_dtype=jnp.float32,
                         block_rows=block_rows)
    return jnp.transpose(out, (0, 3, 1, 2))               # NHWC -> NCHW


# ----------------------------------------------------------------------------
# Pure-JAX reference (mirrors the kernels' bf16 operand quantization/folding)
# ----------------------------------------------------------------------------
def _ref_conv(x, w_folded, bias, pad, out_dtype):
    xb = x.astype(jnp.bfloat16)
    wb = jnp.transpose(w_folded, (2, 3, 1, 0)).astype(jnp.bfloat16)  # HWIO
    y = lax.conv_general_dilated(
        xb, wb, window_strides=(1, 1),
        padding=[(pad, pad), (pad, pad)],
        dimension_numbers=('NHWC', 'HWIO', 'NHWC'),
        preferred_element_type=jnp.float32)
    y = y + bias.reshape(1, 1, 1, -1)
    y = y * jax.nn.sigmoid(y)
    return y.astype(out_dtype)


def c2f_reference(x_nchw, params, n=1, shortcut=False):
    x = jnp.transpose(x_nchw, (0, 2, 3, 1))
    c = params['c']
    w, b = _fold_bn(params['cv1'])
    y = _ref_conv(x, w, b, 0, jnp.bfloat16)
    chunks = [y]
    cur = y[..., c:]
    for i in range(n):
        blk = params['m'][i]
        w1, b1 = _fold_bn(blk['cv1'])
        w2, b2 = _fold_bn(blk['cv2'])
        h = _ref_conv(cur, w1, b1, 1, jnp.bfloat16)
        if shortcut:
            ob = _ref_conv(h, w2, b2, 1, jnp.float32)
            cur = (cur.astype(jnp.float32) + ob).astype(jnp.bfloat16)
        else:
            cur = _ref_conv(h, w2, b2, 1, jnp.bfloat16)
        chunks.append(cur)
    cat = jnp.concatenate(chunks, axis=-1)
    w, b = _fold_bn(params['cv2'])
    out = _ref_conv(cat, w, b, 0, jnp.float32)
    return jnp.transpose(out, (0, 3, 1, 2))


# ----------------------------------------------------------------------------
# Deterministic parameter init (Conv2d weight + folded BatchNorm2d, eval mode)
# ----------------------------------------------------------------------------
def init_conv_params(key, c_out, c_in, k):
    kw, kg, kb, km, kv = jax.random.split(key, 5)
    w = jax.random.normal(kw, (c_out, c_in, k, k), jnp.float32) * 0.1
    gamma = 1.0 + 0.1 * jax.random.normal(kg, (c_out,), jnp.float32)
    beta = 0.1 * jax.random.normal(kb, (c_out,), jnp.float32)
    mean = 0.1 * jax.random.normal(km, (c_out,), jnp.float32)
    var = jax.random.uniform(kv, (c_out,), jnp.float32, minval=0.5, maxval=1.5)
    eps = 1e-5                                            # nn.BatchNorm2d default
    scale = gamma / jnp.sqrt(var + eps)
    bias = beta - mean * scale
    return {'w': w, 'scale': scale, 'bias': bias}


if __name__ == "__main__":
    key = jax.random.PRNGKey(0)
    # C2f(c1=4, c2=4, n=1, shortcut, e=0.5)  ->  c = 2
    c1, c2, n = 4, 4, 1
    N, H, W = 2, 16, 16
    c = int(c2 * 0.5)

    k_x, k_cv1, k_cv2, k_b1, k_b2 = jax.random.split(key, 5)
    params = {
        'c': c,
        'cv1': init_conv_params(k_cv1, 2 * c, c1, 1),
        'cv2': init_conv_params(k_cv2, c2, (2 + n) * c, 1),
        'm': [{'cv1': init_conv_params(k_b1, c, c, 3),    # Bottleneck e=1.0 -> c_ = c
               'cv2': init_conv_params(k_b2, c, c, 3)}],
    }

    x = jax.random.normal(k_x, (N, c1, H, W), jnp.float32)   # NCHW, like PyTorch

    # Small tiles so multi-tile grids, the double-buffered halo prefetch and
    # both shortcut paths are exercised at these tiny demo shapes
    # (production defaults are VMEM-budget-driven and much larger).
    for shortcut in (False, True):
        out = c2f_forward(x, params, n=n, shortcut=shortcut,
                          block_rows=128, row_tile=4)
        out = jax.block_until_ready(out)
        ref = c2f_reference(x, params, n=n, shortcut=shortcut)
        assert out.shape == (N, c2, H, W)
        np.testing.assert_allclose(np.asarray(out), np.asarray(ref),
                                   rtol=3e-2, atol=3e-2)

    print("KERNEL_OK")
</pallas_src>

<mosaic_0001>
module attributes {stable_mosaic.version = 11 : i64} {
  func.func @_probe_kernel(%arg0: memref<16x3xbf16, #tpu.memory_space<vmem>>, %arg1: memref<27x8xbf16, #tpu.memory_space<vmem>>, %arg2: memref<16x8xf32, #tpu.memory_space<vmem>>) attributes {dimension_semantics = [], scalar_prefetch = 0 : i64, scratch_operands = 0 : i64, tpu.core_type = #tpu.core_type<tc>} {
    %c0 = arith.constant 0 : index
    %c0_0 = arith.constant 0 : index
    %0 = vector.load %arg0[%c0, %c0_0] : memref<16x3xbf16, #tpu.memory_space<vmem>>, vector<16x3xbf16>
    %1 = tpu.concatenate %0, %0, %0, %0, %0, %0, %0, %0, %0 in 1 : vector<16x3xbf16>, vector<16x3xbf16>, vector<16x3xbf16>, vector<16x3xbf16>, vector<16x3xbf16>, vector<16x3xbf16>, vector<16x3xbf16>, vector<16x3xbf16>, vector<16x3xbf16> -> vector<16x27xbf16>
    %c0_1 = arith.constant 0 : index
    %c0_2 = arith.constant 0 : index
    %2 = vector.load %arg1[%c0_1, %c0_2] : memref<27x8xbf16, #tpu.memory_space<vmem>>, vector<27x8xbf16>
    %cst = arith.constant dense<0.000000e+00> : vector<16x8xf32>
    %3 = tpu.matmul %1, %2, %cst {dimension_numbers = #tpu.dot_dimension_numbers<[1], [0], [0], [1], [0, 0, 1, 1], [], []>} : vector<16x27xbf16>, vector<27x8xbf16>, vector<16x8xf32> -> vector<16x8xf32>
    %c0_3 = arith.constant 0 : index
    %c0_4 = arith.constant 0 : index
    %4 = vector.load %arg2[%c0_3, %c0_4] : memref<16x8xf32, #tpu.memory_space<vmem>>, vector<16x8xf32>
    tpu.vector_store %arg2[%c0_3, %c0_4], %3 {strides = array<i32>} : memref<16x8xf32, #tpu.memory_space<vmem>>, vector<16x8xf32>,
    return
  }
}

module attributes {stable_mosaic.version = 11 : i64} {
  func.func @kernel(%arg0: i32, %arg1: memref<128x4xbf16, #tpu.memory_space<vmem>>, %arg2: memref<4x4xbf16, #tpu.memory_space<vmem>>, %arg3: memref<1x4xf32, #tpu.memory_space<vmem>>, %arg4: memref<128x4xbf16, #tpu.memory_space<vmem>>) attributes {dimension_semantics = [#tpu.dimension_semantics<parallel>], iteration_bounds = array<i64: 4>, scalar_prefetch = 0 : i64, scratch_operands = 0 : i64, tpu.core_type = #tpu.core_type<tc>, window_params = [{transform_indices = @transform_0, window_bounds = array<i64: 128, 4>}, {pipeline_mode = #tpu.pipeline_mode<synchronous>, transform_indices = @transform_1, window_bounds = array<i64: 4, 4>}, {pipeline_mode = #tpu.pipeline_mode<synchronous>, transform_indices = @transform_2, window_bounds = array<i64: 1, 4>}, {transform_indices = @transform_3, window_bounds = array<i64: 128, 4>}]} {
    %c0 = arith.constant 0 : index
    %c0_0 = arith.constant 0 : index
    %0 = vector.load %arg1[%c0, %c0_0] : memref<128x4xbf16, #tpu.memory_space<vmem>>, vector<128x4xbf16>
    %c0_1 = arith.constant 0 : index
    %c0_2 = arith.constant 0 : index
    %1 = vector.load %arg2[%c0_1, %c0_2] : memref<4x4xbf16, #tpu.memory_space<vmem>>, vector<4x4xbf16>
    %cst = arith.constant dense<0.000000e+00> : vector<128x4xf32>
    %2 = tpu.matmul %0, %1, %cst {dimension_numbers = #tpu.dot_dimension_numbers<[1], [0], [0], [1], [0, 0, 1, 1], [], []>} : vector<128x4xbf16>, vector<4x4xbf16>, vector<128x4xf32> -> vector<128x4xf32>
    %c0_3 = arith.constant 0 : index
    %c0_4 = arith.constant 0 : index
    %3 = vector.load %arg3[%c0_3, %c0_4] : memref<1x4xf32, #tpu.memory_space<vmem>>, vector<1x4xf32>
    %4 = vector.broadcast %3 : vector<1x4xf32> to vector<128x4xf32>
    %5 = arith.addf %2, %4 : vector<128x4xf32>
    %cst_5 = arith.constant 0.000000e+00 : f32
    %6 = vector.broadcast %cst_5 : f32 to vector<128x4xf32>
    %7 = arith.subf %6, %5 : vector<128x4xf32>
    %8 = math.exp %7 : vector<128x4xf32>
    %cst_6 = arith.constant 1.000000e+00 : f32
    %9 = vector.broadcast %cst_6 : f32 to vector<128x4xf32>
    %10 = arith.addf %9, %8 : vector<128x4xf32>
    %11 = tpu.reciprocal %10 {approx = true} : vector<128x4xf32> -> vector<128x4xf32>
    %12 = arith.mulf %5, %11 : vector<128x4xf32>
    %13 = arith.truncf %12 : vector<128x4xf32> to vector<128x4xbf16>
    %c0_7 = arith.constant 0 : index
    %c0_8 = arith.constant 0 : index
    %14 = vector.load %arg4[%c0_7, %c0_8] : memref<128x4xbf16, #tpu.memory_space<vmem>>, vector<128x4xbf16>
    tpu.vector_store %arg4[%c0_7, %c0_8], %13 {strides = array<i32>} : memref<128x4xbf16, #tpu.memory_space<vmem>>, vector<128x4xbf16>,
    return
  }
  func.func @transform_0(%arg0: i32) -> (i32, i32) {
    %c0_i32 = arith.constant 0 : i32
    %c0_i32_0 = arith.constant 0 : i32
    return %arg0, %c0_i32 : i32, i32
  }
  func.func @transform_1(%arg0: i32) -> (i32, i32) {
    %c0_i32 = arith.constant 0 : i32
    %c0_i32_0 = arith.constant 0 : i32
    %c0_i32_1 = arith.constant 0 : i32
    return %c0_i32, %c0_i32_0 : i32, i32
  }
  func.func @transform_2(%arg0: i32) -> (i32, i32) {
    %c0_i32 = arith.constant 0 : i32
    %c0_i32_0 = arith.constant 0 : i32
    %c0_i32_1 = arith.constant 0 : i32
    return %c0_i32, %c0_i32_0 : i32, i32
  }
  func.func @transform_3(%arg0: i32) -> (i32, i32) {
    %c0_i32 = arith.constant 0 : i32
    %c0_i32_0 = arith.constant 0 : i32
    return %arg0, %c0_i32 : i32, i32
  }
}

</mosaic_0001>

<llo_original>
// kernel: tpu_custom_call.1
$region0: #{tpu_custom_call.1}
  #allocation0 [shape = 'u32[]', space=smem, size = 0x4, offset = 0x4, fixed_abs, tag = 'smem constant byte address 0x4 - core index']
  #allocation1 [shape = 'u32[144,128]{1,0:T(1,128)}', space=vmem, size = 0x12000, scoped, tag = 'internal scratch']
  %s0 = inlined_call_operand.vmem [shape: bf16[16,3], index: 0, kind: input, shape index: {}]
  %s1 = inlined_call_operand.vmem [shape: bf16[27,8], index: 1, kind: input, shape index: {}]
  %s2 = inlined_call_operand.vmem [shape: f32[16,8], index: 2, kind: output, shape index: {}]
  %s3 = sld [smem:[#allocation0]]
  $region18: #{tpu_custom_call.1} parent=0
    _
  %s5 = ssub.s32 1, %s3
  %s6 = scalar_select 0, %s5, %s3
  // Predicated region
  $region2: #{tpu_custom_call.1} parent=0 // pred_check
    _
  $region3: #{tpu_custom_call.1} parent=0 // pred_check_branch
    %8 = sbr.rel (0) target = $region5
  $region4: #{tpu_custom_call.1} parent=0 // pred_region
    _
  $region5: #{tpu_custom_call.1} parent=0 // pred_fallthru
    _
  // Predicated region
  $region6: #{tpu_custom_call.1} parent=0 // pred_check
    _
  $region7: #{tpu_custom_call.1} parent=0 // pred_check_branch
    %10 = sbr.rel (0) target = $region9
  $region8: #{tpu_custom_call.1} parent=0 // pred_region
    _
  $region9: #{tpu_custom_call.1} parent=0 // pred_fallthru
    _
  %v12 = vld [vmem:[%s0] sm:$0xf]
  %v13 = vld [vmem:[%s0 + $0x4] sm:$0xf]
  %v16 = vunpack.c.l.b16 %v12
  %v17 = vunpack.c.l.b16 %v13
  %v18 = vpack.c.b16 %v17, %v16
  %19 = vrot.lane.b32.xlu0 %v18, 3
  %v20 = vpop.permute.xlu0 %19
  %21 = vrot.lane.b32.xlu0 %v18, 6
  %v22 = vpop.permute.xlu0 %21
  %23 = vrot.lane.b32.xlu0 %v18, 9
  %v24 = vpop.permute.xlu0 %23
  %25 = vrot.lane.b32.xlu0 %v18, 12
  %v26 = vpop.permute.xlu0 %25
  %27 = vrot.lane.b32.xlu0 %v18, 15
  %v28 = vpop.permute.xlu0 %27
  %29 = vrot.lane.b32.xlu0 %v18, 18
  %v30 = vpop.permute.xlu0 %29
  %31 = vrot.lane.b32.xlu0 %v18, 21
  %v32 = vpop.permute.xlu0 %31
  %33 = vrot.lane.b32.xlu0 %v18, 24
  %v34 = vpop.permute.xlu0 %33
  %vm35 = vcmask 23552
  %v38 = vsel %vm35, %v18, %v20
  %vm39 = vcmask 48128
  %v41 = vsel %vm39, %v38, %v22
  %vm42 = vcmask 72704
  %v44 = vsel %vm42, %v41, %v24
  %vm45 = vcmask 97280
  %v47 = vsel %vm45, %v44, %v26
  %vm48 = vcmask 121856
  %v50 = vsel %vm48, %v47, %v28
  %vm51 = vcmask 146432
  %v53 = vsel %vm51, %v50, %v30
  %vm54 = vcmask 171008
  %v56 = vsel %vm54, %v53, %v32
  %vm57 = vcmask 195584
  %v59 = vsel %vm57, %v56, %v34
  %v60 = vld [vmem:[%s1] sm:$0xf]
  %v61 = vld [vmem:[%s1 + $0x4] sm:$0xf]
  %v62 = vld [vmem:[%s1 + $0x8] sm:$0xf]
  %v63 = vld [vmem:[%s1 + $0xc] sm:$0x3]
  %v68 = vunpack.c.l.b16 %v60
  %v69 = vunpack.c.l.b16 %v61
  %v70 = vunpack.c.l.b16 %v62
  %v71 = vunpack.c.l.b16 %v63
  %v72 = vpack.c.b16 %v69, %v68
  %v73 = vpack.c.b16 %v71, %v70
  %vm75 = vcmask 220160
  %v76 = vsel %vm75, %v59, 0
  %vm78 = vcmask 1044480
  %vm79 = vcmask 1045504
  %v80 = vsel %vm78, 4294967295, 65535
  %v81 = vsel %vm79, %v80, 0
  %v83 = vand.u32 %v73, %v81
  %85 = vmatprep.subr.bf16.mxu0 0
  %86 = vmatpush1.bf16.msra.mxu0 %v72
  %87 = vmatprep.subr.bf16.mxu0 0
  %88 = vmatpush1.bf16.msra.mxu0 %v83
  %89 = vmatprep.subr.bf16.mxu0 0
  %90 = vmatpush1.bf16.msra.mxu0 0
  %91 = vmatprep.subr.bf16.mxu0 0
  %92 = vmatpush1.bf16.msra.mxu0 0
  %93 = vmatprep.subr.bf16.mxu0 0
  %94 = vmatpush1.bf16.msra.mxu0 0
  %95 = vmatprep.subr.bf16.mxu0 0
  %96 = vmatpush1.bf16.msra.mxu0 0
  %97 = vmatprep.subr.bf16.mxu0 0
  %98 = vmatpush1.bf16.msra.mxu0 0
  %99 = vmatprep.subr.bf16.mxu0 0
  %100 = vmatpush1.bf16.msra.mxu0 0
  %101 = vmatprep.subr.bf16.mxu0 0
  %102 = vmatpush1.bf16.msra.mxu0 0
  %103 = vmatprep.subr.bf16.mxu0 0
  %104 = vmatpush1.bf16.msra.mxu0 0
  %105 = vmatprep.subr.bf16.mxu0 0
  %106 = vmatpush1.bf16.msra.mxu0 0
  %107 = vmatprep.subr.bf16.mxu0 0
  %108 = vmatpush1.bf16.msra.mxu0 0
  %109 = vmatprep.subr.bf16.mxu0 0
  %110 = vmatpush1.bf16.msra.mxu0 0
  %111 = vmatprep.subr.bf16.mxu0 0
  %112 = vmatpush1.bf16.msra.mxu0 0
  %113 = vmatprep.subr.bf16.mxu0 0
  %114 = vmatpush1.bf16.msra.mxu0 0
  %115 = vmatprep.subr.bf16.mxu0 0
  %116 = vmatpush1.bf16.msra.mxu0 0
  %117 = vmatprep.mubr.bf16.mxu0 0
  %118 = vmatmul.mubr.bf16.gmra.mrb[0].mxu0 %v76
  %v119 = vpop.f32.mrb[0].mxu0
  %v120 = vadd.f32 0.0, %v119
  %v121 = vpop.f32.mrb[0].mxu0
  %v122 = vpop.f32.mrb[0].mxu0
  %v123 = vadd.f32 0.0, %v122
  %v124 = vpop.f32.mrb[0].mxu0
  %125 = vdwg.mxu0
  %vm126 = vcmask 64512
  %127 = vst.msk [vmem:[%s2] sm:$0xff] %vm126, %v120
  %128 = vst.msk [vmem:[%s2 + $0x8] sm:$0xff] %vm126, %v123
  // Predicated region
  $region10: #{tpu_custom_call.1} parent=0 // pred_check
    _
  $region11: #{tpu_custom_call.1} parent=0 // pred_check_branch
    %130 = sbr.rel (0) target = $region13
  $region12: #{tpu_custom_call.1} parent=0 // pred_region
    _
  $region13: #{tpu_custom_call.1} parent=0 // pred_fallthru
    _
  // Predicated region
  $region14: #{tpu_custom_call.1} parent=0 // pred_check
    _
  $region15: #{tpu_custom_call.1} parent=0 // pred_check_branch
    %132 = sbr.rel (0) target = $region17
  $region16: #{tpu_custom_call.1} parent=0 // pred_region
    _
  $region17: #{tpu_custom_call.1} parent=0 // pred_fallthru
    _

// kernel: tpu_custom_call.1
$region0: #{tpu_custom_call.1}
  #allocation0 [shape = 'u32[]', space=smem, size = 0x4, offset = 0x4, fixed_abs, tag = 'smem constant byte address 0x4 - core index']
  #allocation1 [shape = 'u32[144,128]{1,0:T(1,128)}', space=vmem, size = 0x12000, scoped, tag = 'internal scratch']
  %s0 = inlined_call_operand.vmem [shape: bf16[512,4], index: 0, kind: input, shape index: {}]
  %s1 = inlined_call_operand.vmem [shape: bf16[4,4], index: 1, kind: input, shape index: {}]
  %s2 = inlined_call_operand.vmem [shape: f32[1,4], index: 2, kind: input, shape index: {}]
  %s3 = inlined_call_operand.vmem [shape: bf16[512,4], index: 3, kind: output, shape index: {}]
  %s4 = sld [smem:[#allocation0]]
  $region45: #{tpu_custom_call.1} parent=0
    _
  %s6 = ssub.s32 1, %s4
  %s7 = scalar_select 0, %s6, %s4
  loop: start=0, step=1, limit=6
  $region2: #{tpu_custom_call.1} parent=0 // loop_pre_header
    _
  $region3: #{tpu_custom_call.1} parent=0 // loop_header
    %s9 = sphi 0, %s13
    %p10 = scmp.ge.s32.totalorder %s9, 6
    %s19 = sphi 0, %s21
    %s22 = sphi 0, %s19
    %s23 = sphi 0, %s22
    %s39 = sphi 0, %s23
    %s43 = sphi 0, %s43
    %s45 = sphi 0, %s43
    %s46 = sphi 0, %s45
    %s60 = sphi 0, %s46
    %s64 = sphi 0, %s64
    %s66 = sphi 0, %s64
    %s67 = sphi 0, %s66
    %s81 = sphi 0, %s67
    %s87 = sphi 0, %s89
    %s90 = sphi 0, %s87
    %s91 = sphi 0, %s90
    %s107 = sphi 0, %s91
  $region4: #{tpu_custom_call.1} parent=0 // loop_header_branch
    %12 = sbr.rel (%p10) target = $region8
  $region5: #{tpu_custom_call.1} parent=0 // loop_body
    %s14 = ssub.s32 %s9, 1
    %s15 = ssub.s32 %s9, 2
    %s16 = sadd.s32 %s9, 1
    %s17 = ssub.s32 %s9, %s16
    %p18 = scmp.eq.s32.totalorder %s17, 0
    %s20 = sadd.s32 %s19, 1
    %s21 = scalar_select %p18, %s19, %s20
    %p24 = pneg %p18
    %p25 = scmp.eq.s32.totalorder %s9, 3
    %p26 = por %p24, %p25
    %p27 = scmp.ne.s32.totalorder %s19, %s22
    %p28 = scmp.eq.s32.totalorder %s9, 0
    %p29 = por %p27, %p28
    %p30 = scmp.ne.s32.totalorder %s19, %s22
    %p31 = scmp.eq.s32.totalorder %s14, 3
    %p32 = por %p30, %p31
    %p33 = scmp.ne.s32.totalorder %s22, %s23
    %p34 = scmp.eq.s32.totalorder %s14, 0
    %p35 = por %p33, %p34
    %p36 = scmp.ne.s32.totalorder %s22, %s23
    %p37 = scmp.eq.s32.totalorder %s15, 3
    %p38 = por %p36, %p37
    %p40 = scmp.ne.s32.totalorder %s23, %s39
    %p41 = scmp.eq.s32.totalorder %s15, 0
    %p42 = por %p40, %p41
    %s44 = sadd.s32 %s43, 1
    %p47 = scmp.eq.s32.totalorder %s9, 3
    %p48 = scmp.ne.s32.totalorder %s43, %s45
    %p49 = scmp.eq.s32.totalorder %s9, 0
    %p50 = por %p48, %p49
    %p51 = scmp.ne.s32.totalorder %s43, %s45
    %p52 = scmp.eq.s32.totalorder %s14, 3
    %p53 = por %p51, %p52
    %p54 = scmp.ne.s32.totalorder %s45, %s46
    %p55 = scmp.eq.s32.totalorder %s14, 0
    %p56 = por %p54, %p55
    %p57 = scmp.ne.s32.totalorder %s45, %s46
    %p58 = scmp.eq.s32.totalorder %s15, 3
    %p59 = por %p57, %p58
    %p61 = scmp.ne.s32.totalorder %s46, %s60
    %p62 = scmp.eq.s32.totalorder %s15, 0
    %p63 = por %p61, %p62
    %s65 = sadd.s32 %s64, 1
    %p68 = scmp.eq.s32.totalorder %s9, 3
    %p69 = scmp.ne.s32.totalorder %s64, %s66
    %p70 = scmp.eq.s32.totalorder %s9, 0
    %p71 = por %p69, %p70
    %p72 = scmp.ne.s32.totalorder %s64, %s66
    %p73 = scmp.eq.s32.totalorder %s14, 3
    %p74 = por %p72, %p73
    %p75 = scmp.ne.s32.totalorder %s66, %s67
    %p76 = scmp.eq.s32.totalorder %s14, 0
    %p77 = por %p75, %p76
    %p78 = scmp.ne.s32.totalorder %s66, %s67
    %p79 = scmp.eq.s32.totalorder %s15, 3
    %p80 = por %p78, %p79
    %p82 = scmp.ne.s32.totalorder %s67, %s81
    %p83 = scmp.eq.s32.totalorder %s15, 0
    %p84 = por %p82, %p83
    %s85 = ssub.s32 %s9, %s16
    %p86 = scmp.eq.s32.totalorder %s85, 0
    %s88 = sadd.s32 %s87, 1
    %s89 = scalar_select %p86, %s87, %s88
    %p92 = pneg %p86
    %p93 = scmp.eq.s32.totalorder %s9, 3
    %p94 = por %p92, %p93
    %p95 = scmp.ne.s32.totalorder %s87, %s90
    %p96 = scmp.eq.s32.totalorder %s9, 0
    %p97 = por %p95, %p96
    %p98 = scmp.ne.s32.totalorder %s87, %s90
    %p99 = scmp.eq.s32.totalorder %s14, 3
    %p100 = por %p98, %p99
    %p101 = scmp.ne.s32.totalorder %s90, %s91
    %p102 = scmp.eq.s32.totalorder %s14, 0
    %p103 = por %p101, %p102
    %p104 = scmp.ne.s32.totalorder %s90, %s91
    %p105 = scmp.eq.s32.totalorder %s15, 3
    %p106 = por %p104, %p105
    %p108 = scmp.ne.s32.totalorder %s91, %s107
    %p109 = scmp.eq.s32.totalorder %s15, 0
    %p110 = por %p108, %p109
    %p111 = scmp.le.s32.totalorder 1, %s9
    %p112 = scmp.lt.s32.totalorder %s9, 5
    %p113 = pnand %p111, %p112
    %p114 = pneg %p113
    // Predicated region
    $region9: #{tpu_custom_call.1} parent=5 // pred_check
      _
    $region10: #{tpu_custom_call.1} parent=5 // pred_check_branch
      %116 = sbr.rel (%p113) target = $region12
    $region11: #{tpu_custom_call.1} parent=5 // pred_region
      %s117 = ssub.s32 %s9, 1
      // Predicated region
      $region13: #{tpu_custom_call.1} parent=11 // pred_check
        %p118 = pneg %p56
      $region14: #{tpu_custom_call.1} parent=11 // pred_check_branch
        %120 = sbr.rel (%p118) target = $region16
      $region15: #{tpu_custom_call.1} parent=11 // pred_region
        _
      $region16: #{tpu_custom_call.1} parent=11 // pred_fallthru
        _
      // Predicated region
      $region17: #{tpu_custom_call.1} parent=11 // pred_check
        %p121 = pneg %p77
      $region18: #{tpu_custom_call.1} parent=11 // pred_check_branch
        %123 = sbr.rel (%p121) target = $region20
      $region19: #{tpu_custom_call.1} parent=11 // pred_region
        _
      $region20: #{tpu_custom_call.1} parent=11 // pred_fallthru
        _
    $region12: #{tpu_custom_call.1} parent=5 // pred_fallthru
      _
    %p124 = scmp.lt.s32.totalorder %s9, 4
    // Predicated region
    $region21: #{tpu_custom_call.1} parent=5 // pred_check
      %p125 = pneg %p124
    $region22: #{tpu_custom_call.1} parent=5 // pred_check_branch
      %127 = sbr.rel (%p125) target = $region24
    $region23: #{tpu_custom_call.1} parent=5 // pred_region
      // Predicated region
      $region25: #{tpu_custom_call.1} parent=23 // pred_check
        %p128 = pneg %p29
      $region26: #{tpu_custom_call.1} parent=23 // pred_check_branch
        %130 = sbr.rel (%p128) target = $region28
      $region27: #{tpu_custom_call.1} parent=23 // pred_region
        %s131 = smul.u32 16, %s9
        %p132 = scmp.lt.s32.totalorder %s131, 63
        %s133 = scalar_select %p132, %s131, 63
        %s134 = smul.addr %s133, 4
        %s135 = scalar_lea.vmem %s0, %s134
        %s136 = smul.u32 16, %s9
      $region28: #{tpu_custom_call.1} parent=23 // pred_fallthru
        _
    $region24: #{tpu_custom_call.1} parent=5 // pred_fallthru
      _
    %p137 = scmp.le.s32.totalorder 1, %s9
    %p138 = scmp.lt.s32.totalorder %s9, 5
    %p139 = pnand %p137, %p138
    %p140 = pneg %p139
    // Predicated region
    $region29: #{tpu_custom_call.1} parent=5 // pred_check
      _
    $region30: #{tpu_custom_call.1} parent=5 // pred_check_branch
      %142 = sbr.rel (%p139) target = $region32
    $region31: #{tpu_custom_call.1} parent=5 // pred_region
      %s143 = ssub.s32 %s9, 1
      %s144 = smul.u32 16, %s14
      %p145 = scmp.lt.s32.totalorder %s144, 63
      %s146 = scalar_select %p145, %s144, 63
      %s147 = smul.addr %s146, 4
      %s148 = scalar_lea.vmem %s0, %s147
      %p149 = pneg %p35
      %p150 = pneg %p32
      %p151 = pneg %p56
      %p152 = pneg %p53
      %p153 = pneg %p77
      %p154 = pneg %p74
      %p155 = pneg %p103
      %p156 = pneg %p100
      %s157 = smul.u32 16, %s14
      %p158 = scmp.lt.s32.totalorder %s157, 63
      %s159 = scalar_select %p158, %s157, 63
      %s160 = smul.addr %s159, 4
      %s161 = scalar_lea.vmem %s3, %s160
      %s162 = smul.u32 16, %s14
      %p163 = scmp.lt.s32.totalorder %s162, 63
      %s164 = scalar_select %p163, %s162, 63
      %s165 = smul.addr %s164, 4
      %s166 = scalar_lea.vmem %s0, %s165
      %s167 = smul.u32 16, %s14
      %s168 = smul.u32 16, %s14
      %p169 = scmp.lt.s32.totalorder %s168, 63
      %s170 = scalar_select %p169, %s168, 63
      %s171 = smul.addr %s170, 4
      %s172 = scalar_lea.vmem %s3, %s171
      %s173 = smul.u32 16, %s14
      %v175 = vld [vmem:[%s166] sm:$0xf]
      %v176 = vld [vmem:[%s166 + $0x4] sm:$0xf]
      %v177 = vld [vmem:[%s166 + $0x8] sm:$0xf]
      %v178 = vld [vmem:[%s166 + $0xc] sm:$0xf]
      %v179 = vld [vmem:[%s166 + $0x10] sm:$0xf]
      %v180 = vld [vmem:[%s166 + $0x14] sm:$0xf]
      %v181 = vld [vmem:[%s166 + $0x18] sm:$0xf]
      %v182 = vld [vmem:[%s166 + $0x1c] sm:$0xf]
      %v183 = vld [vmem:[%s166 + $0x20] sm:$0xf]
      %v184 = vld [vmem:[%s166 + $0x24] sm:$0xf]
      %v185 = vld [vmem:[%s166 + $0x28] sm:$0xf]
      %v186 = vld [vmem:[%s166 + $0x2c] sm:$0xf]
      %v187 = vld [vmem:[%s166 + $0x30] sm:$0xf]
      %v188 = vld [vmem:[%s166 + $0x34] sm:$0xf]
      %v189 = vld [vmem:[%s166 + $0x38] sm:$0xf]
      %v190 = vld [vmem:[%s166 + $0x3c] sm:$0xf]
      %v191 = vld [vmem:[%s1] sm:$0x3]
      %v192 = vld [vmem:[%s2] sm:$0x1]
      %v194 = vlaneseq
      %v195 = vshrl.u32 %v194, 7
      %v196 = vsub.s32 0, %v195
      %v197 = vrot.slane %v192, %v196
      %v215 = vunpack.c.l.b16 %v175
      %v216 = vunpack.c.l.b16 %v176
      %v217 = vunpack.c.l.b16 %v177
      %v218 = vunpack.c.l.b16 %v178
      %v219 = vunpack.c.l.b16 %v179
      %v220 = vunpack.c.l.b16 %v180
      %v221 = vunpack.c.l.b16 %v181
      %v222 = vunpack.c.l.b16 %v182
      %v223 = vunpack.c.l.b16 %v183
      %v224 = vunpack.c.l.b16 %v184
      %v225 = vunpack.c.l.b16 %v185
      %v226 = vunpack.c.l.b16 %v186
      %v227 = vunpack.c.l.b16 %v187
      %v228 = vunpack.c.l.b16 %v188
      %v229 = vunpack.c.l.b16 %v189
      %v230 = vunpack.c.l.b16 %v190
      %v231 = vpack.c.b16 %v216, %v215
      %v232 = vpack.c.b16 %v218, %v217
      %v233 = vpack.c.b16 %v220, %v219
      %v234 = vpack.c.b16 %v222, %v221
      %v235 = vpack.c.b16 %v224, %v223
      %v236 = vpack.c.b16 %v226, %v225
      %v237 = vpack.c.b16 %v228, %v227
      %v238 = vpack.c.b16 %v230, %v229
      %vm239 = vcmask 31744
      %v241 = vsel %vm239, %v231, 0
      %v244 = vsel %vm239, %v232, 0
      %v247 = vsel %vm239, %v233, 0
      %v250 = vsel %vm239, %v234, 0
      %v253 = vsel %vm239, %v235, 0
      %v256 = vsel %vm239, %v236, 0
      %v259 = vsel %vm239, %v237, 0
      %v262 = vsel %vm239, %v238, 0
      %vm264 = vcmask 1041408
      %v266 = vsel %vm264, %v191, 0
      %268 = vmatprep.subr.bf16.mxu0 0
      %269 = vmatpush1.bf16.msra.mxu0 %v266
      %270 = vmatprep.subr.bf16.mxu0 0
      %271 = vmatpush1.bf16.msra.mxu0 0
      %272 = vmatprep.subr.bf16.mxu0 0
      %273 = vmatpush1.bf16.msra.mxu0 0
      %274 = vmatprep.subr.bf16.mxu0 0
      %275 = vmatpush1.bf16.msra.mxu0 0
      %276 = vmatprep.subr.bf16.mxu0 0
      %277 = vmatpush1.bf16.msra.mxu0 0
      %278 = vmatprep.subr.bf16.mxu0 0
      %279 = vmatpush1.bf16.msra.mxu0 0
      %280 = vmatprep.subr.bf16.mxu0 0
      %281 = vmatpush1.bf16.msra.mxu0 0
      %282 = vmatprep.subr.bf16.mxu0 0
      %283 = vmatpush1.bf16.msra.mxu0 0
      %284 = vmatprep.subr.bf16.mxu0 0
      %285 = vmatpush1.bf16.msra.mxu0 0
      %286 = vmatprep.subr.bf16.mxu0 0
      %287 = vmatpush1.bf16.msra.mxu0 0
      %288 = vmatprep.subr.bf16.mxu0 0
      %289 = vmatpush1.bf16.msra.mxu0 0
      %290 = vmatprep.subr.bf16.mxu0 0
      %291 = vmatpush1.bf16.msra.mxu0 0
      %292 = vmatprep.subr.bf16.mxu0 0
      %293 = vmatpush1.bf16.msra.mxu0 0
      %294 = vmatprep.subr.bf16.mxu0 0
      %295 = vmatpush1.bf16.msra.mxu0 0
      %296 = vmatprep.subr.bf16.mxu0 0
      %297 = vmatpush1.bf16.msra.mxu0 0
      %298 = vmatprep.subr.bf16.mxu0 0
      %299 = vmatpush1.bf16.msra.mxu0 0
      %300 = vmatprep.mubr.bf16.mxu0 0
      %301 = vmatmul.mubr.bf16.gmra.mrb[0].mxu0 %v241
      %v302 = vpop.f32.mrb[0].mxu0
      %v303 = vadd.f32 %v197, %v302
      %v304 = vpop.f32.mrb[0].mxu0
      %v305 = vpop.f32.mrb[0].mxu0
      %v306 = vadd.f32 %v197, %v305
      %v307 = vpop.f32.mrb[0].mxu0
      %308 = vmatprep.mubr.bf16.mxu0 0
      %309 = vmatmul.mubr.bf16.gmra.mrb[0].mxu0 %v244
      %v310 = vpop.f32.mrb[0].mxu0
      %v311 = vadd.f32 %v197, %v310
      %v312 = vpop.f32.mrb[0].mxu0
      %v313 = vpop.f32.mrb[0].mxu0
      %v314 = vadd.f32 %v197, %v313
      %v315 = vpop.f32.mrb[0].mxu0
      %316 = vmatprep.mubr.bf16.mxu0 0
      %317 = vmatmul.mubr.bf16.gmra.mrb[0].mxu0 %v247
      %v318 = vpop.f32.mrb[0].mxu0
      %v319 = vadd.f32 %v197, %v318
      %v320 = vpop.f32.mrb[0].mxu0
      %v321 = vpop.f32.mrb[0].mxu0
      %v322 = vadd.f32 %v197, %v321
      %v323 = vpop.f32.mrb[0].mxu0
      %324 = vmatprep.mubr.bf16.mxu0 0
      %325 = vmatmul.mubr.bf16.gmra.mrb[0].mxu0 %v250
      %v326 = vpop.f32.mrb[0].mxu0
      %v327 = vadd.f32 %v197, %v326
      %v328 = vpop.f32.mrb[0].mxu0
      %v329 = vpop.f32.mrb[0].mxu0
      %v330 = vadd.f32 %v197, %v329
      %v331 = vpop.f32.mrb[0].mxu0
      %332 = vmatprep.mubr.bf16.mxu0 0
      %333 = vmatmul.mubr.bf16.gmra.mrb[0].mxu0 %v253
      %v334 = vpop.f32.mrb[0].mxu0
      %v335 = vadd.f32 %v197, %v334
      %v336 = vpop.f32.mrb[0].mxu0
      %v337 = vpop.f32.mrb[0].mxu0
      %v338 = vadd.f32 %v197, %v337
      %v339 = vpop.f32.mrb[0].mxu0
      %340 = vmatprep.mubr.bf16.mxu0 0
      %341 = vmatmul.mubr.bf16.gmra.mrb[0].mxu0 %v256
      %v342 = vpop.f32.mrb[0].mxu0
      %v343 = vadd.f32 %v197, %v342
      %v344 = vpop.f32.mrb[0].mxu0
      %v345 = vpop.f32.mrb[0].mxu0
      %v346 = vadd.f32 %v197, %v345
      %v347 = vpop.f32.mrb[0].mxu0
      %348 = vmatprep.mubr.bf16.mxu0 0
      %349 = vmatmul.mubr.bf16.gmra.mrb[0].mxu0 %v259
      %v350 = vpop.f32.mrb[0].mxu0
      %v351 = vadd.f32 %v197, %v350
      %v352 = vpop.f32.mrb[0].mxu0
      %v353 = vpop.f32.mrb[0].mxu0
      %v354 = vadd.f32 %v197, %v353
      %v355 = vpop.f32.mrb[0].mxu0
      %356 = vmatprep.mubr.bf16.mxu0 0
      %357 = vmatmul.mubr.bf16.gmra.mrb[0].mxu0 %v262
      %v358 = vpop.f32.mrb[0].mxu0
      %v359 = vadd.f32 %v197, %v358
      %v360 = vpop.f32.mrb[0].mxu0
      %v361 = vpop.f32.mrb[0].mxu0
      %v362 = vadd.f32 %v197, %v361
      %v363 = vpop.f32.mrb[0].mxu0
      %364 = vdwg.mxu0
      %v365 = vsub.f32 0.0, %v303
      %v366 = vsub.f32 0.0, %v306
      %v367 = vsub.f32 0.0, %v311
      %v368 = vsub.f32 0.0, %v314
      %v369 = vsub.f32 0.0, %v319
      %v370 = vsub.f32 0.0, %v322
      %v371 = vsub.f32 0.0, %v327
      %v372 = vsub.f32 0.0, %v330
      %v373 = vsub.f32 0.0, %v335
      %v374 = vsub.f32 0.0, %v338
      %v375 = vsub.f32 0.0, %v343
      %v376 = vsub.f32 0.0, %v346
      %v377 = vsub.f32 0.0, %v351
      %v378 = vsub.f32 0.0, %v354
      %v379 = vsub.f32 0.0, %v359
      %v380 = vsub.f32 0.0, %v362
      %v381 = vmul.f32 %v365, 1.442695
      %v382 = vpow.pop %v381
      %v383 = vmul.f32 %v366, 1.442695
      %v384 = vpow.pop %v383
      %v385 = vmul.f32 %v367, 1.442695
      %v386 = vpow.pop %v385
      %v387 = vmul.f32 %v368, 1.442695
      %v388 = vpow.pop %v387
      %v389 = vmul.f32 %v369, 1.442695
      %v390 = vpow.pop %v389
      %v391 = vmul.f32 %v370, 1.442695
      %v392 = vpow.pop %v391
      %v393 = vmul.f32 %v371, 1.442695
      %v394 = vpow.pop %v393
      %v395 = vmul.f32 %v372, 1.442695
      %v396 = vpow.pop %v395
      %v397 = vmul.f32 %v373, 1.442695
      %v398 = vpow.pop %v397
      %v399 = vmul.f32 %v374, 1.442695
      %v400 = vpow.pop %v399
      %v401 = vmul.f32 %v375, 1.442695
      %v402 = vpow.pop %v401
      %v403 = vmul.f32 %v376, 1.442695
      %v404 = vpow.pop %v403
      %v405 = vmul.f32 %v377, 1.442695
      %v406 = vpow.pop %v405
      %v407 = vmul.f32 %v378, 1.442695
      %v408 = vpow.pop %v407
      %v409 = vmul.f32 %v379, 1.442695
      %v410 = vpow.pop %v409
      %v411 = vmul.f32 %v380, 1.442695
      %v412 = vpow.pop %v411
      %v413 = vadd.f32 %v382, 1.0
      %v414 = vadd.f32 %v384, 1.0
      %v415 = vadd.f32 %v386, 1.0
      %v416 = vadd.f32 %v388, 1.0
      %v417 = vadd.f32 %v390, 1.0
      %v418 = vadd.f32 %v392, 1.0
      %v419 = vadd.f32 %v394, 1.0
      %v420 = vadd.f32 %v396, 1.0
      %v421 = vadd.f32 %v398, 1.0
      %v422 = vadd.f32 %v400, 1.0
      %v423 = vadd.f32 %v402, 1.0
      %v424 = vadd.f32 %v404, 1.0
      %v425 = vadd.f32 %v406, 1.0
      %v426 = vadd.f32 %v408, 1.0
      %v427 = vadd.f32 %v410, 1.0
      %v428 = vadd.f32 %v412, 1.0
      %v429 = vrcp.pop %v413
      %v430 = vrcp.pop %v414
      %v431 = vrcp.pop %v415
      %v432 = vrcp.pop %v416
      %v433 = vrcp.pop %v417
      %v434 = vrcp.pop %v418
      %v435 = vrcp.pop %v419
      %v436 = vrcp.pop %v420
      %v437 = vrcp.pop %v421
      %v438 = vrcp.pop %v422
      %v439 = vrcp.pop %v423
      %v440 = vrcp.pop %v424
      %v441 = vrcp.pop %v425
      %v442 = vrcp.pop %v426
      %v443 = vrcp.pop %v427
      %v444 = vrcp.pop %v428
      %v445 = vmul.f32 %v303, %v429
      %v446 = vmul.f32 %v306, %v430
      %v447 = vmul.f32 %v311, %v431
      %v448 = vmul.f32 %v314, %v432
      %v449 = vmul.f32 %v319, %v433
      %v450 = vmul.f32 %v322, %v434
      %v451 = vmul.f32 %v327, %v435
      %v452 = vmul.f32 %v330, %v436
      %v453 = vmul.f32 %v335, %v437
      %v454 = vmul.f32 %v338, %v438
      %v455 = vmul.f32 %v343, %v439
      %v456 = vmul.f32 %v346, %v440
      %v457 = vmul.f32 %v351, %v441
      %v458 = vmul.f32 %v354, %v442
      %v459 = vmul.f32 %v359, %v443
      %v460 = vmul.f32 %v362, %v444
      %v461 = vpack.c.bf16 %v446, %v445
      %v462 = vpack.c.bf16 %v448, %v447
      %v463 = vpack.c.bf16 %v450, %v449
      %v464 = vpack.c.bf16 %v452, %v451
      %v465 = vpack.c.bf16 %v454, %v453
      %v466 = vpack.c.bf16 %v456, %v455
      %v467 = vpack.c.bf16 %v458, %v457
      %v468 = vpack.c.bf16 %v460, %v459
      %v477 = vunpack.c.l.b16 %v461
      %v478 = vunpack.c.h.b16 %v461
      %v479 = vunpack.c.l.b16 %v462
      %v480 = vunpack.c.h.b16 %v462
      %v481 = vunpack.c.l.b16 %v463
      %v482 = vunpack.c.h.b16 %v463
      %v483 = vunpack.c.l.b16 %v464
      %v484 = vunpack.c.h.b16 %v464
      %v485 = vunpack.c.l.b16 %v465
      %v486 = vunpack.c.h.b16 %v465
      %v487 = vunpack.c.l.b16 %v466
      %v488 = vunpack.c.h.b16 %v466
      %v489 = vunpack.c.l.b16 %v467
      %v490 = vunpack.c.h.b16 %v467
      %v491 = vunpack.c.l.b16 %v468
      %v492 = vunpack.c.h.b16 %v468
      %v493 = vpack.c.b16 %v477, %v477
      %v494 = vpack.c.b16 %v478, %v478
      %v495 = vpack.c.b16 %v479, %v479
      %v496 = vpack.c.b16 %v480, %v480
      %v497 = vpack.c.b16 %v481, %v481
      %v498 = vpack.c.b16 %v482, %v482
      %v499 = vpack.c.b16 %v483, %v483
      %v500 = vpack.c.b16 %v484, %v484
      %v501 = vpack.c.b16 %v485, %v485
      %v502 = vpack.c.b16 %v486, %v486
      %v503 = vpack.c.b16 %v487, %v487
      %v504 = vpack.c.b16 %v488, %v488
      %v505 = vpack.c.b16 %v489, %v489
      %v506 = vpack.c.b16 %v490, %v490
      %v507 = vpack.c.b16 %v491, %v491
      %v508 = vpack.c.b16 %v492, %v492
      %vm525 = vcmask 27648
      %526 = vst.msk [vmem:[%s172] sm:$0xf] %vm525, %v493
      %527 = vst.msk [vmem:[%s172 + $0x4] sm:$0xf] %vm525, %v494
      %528 = vst.msk [vmem:[%s172 + $0x8] sm:$0xf] %vm525, %v495
      %529 = vst.msk [vmem:[%s172 + $0xc] sm:$0xf] %vm525, %v496
      %530 = vst.msk [vmem:[%s172 + $0x10] sm:$0xf] %vm525, %v497
      %531 = vst.msk [vmem:[%s172 + $0x14] sm:$0xf] %vm525, %v498
      %532 = vst.msk [vmem:[%s172 + $0x18] sm:$0xf] %vm525, %v499
      %533 = vst.msk [vmem:[%s172 + $0x1c] sm:$0xf] %vm525, %v500
      %534 = vst.msk [vmem:[%s172 + $0x20] sm:$0xf] %vm525, %v501
      %535 = vst.msk [vmem:[%s172 + $0x24] sm:$0xf] %vm525, %v502
      %536 = vst.msk [vmem:[%s172 + $0x28] sm:$0xf] %vm525, %v503
      %537 = vst.msk [vmem:[%s172 + $0x2c] sm:$0xf] %vm525, %v504
      %538 = vst.msk [vmem:[%s172 + $0x30] sm:$0xf] %vm525, %v505
      %539 = vst.msk [vmem:[%s172 + $0x34] sm:$0xf] %vm525, %v506
      %540 = vst.msk [vmem:[%s172 + $0x38] sm:$0xf] %vm525, %v507
      %541 = vst.msk [vmem:[%s172 + $0x3c] sm:$0xf] %vm525, %v508
      %s542 = smul.u32 16, %s14
      %p543 = scmp.lt.s32.totalorder %s542, 63
      %s544 = scalar_select %p543, %s542, 63
      %s545 = smul.addr %s544, 4
      %s546 = scalar_lea.vmem %s3, %s545
      // Predicated region
      $region33: #{tpu_custom_call.1} parent=31 // pred_check
        %p547 = pneg %p100
      $region34: #{tpu_custom_call.1} parent=31 // pred_check_branch
        %549 = sbr.rel (%p547) target = $region36
      $region35: #{tpu_custom_call.1} parent=31 // pred_region
        %s550 = smul.u32 16, %s14
      $region36: #{tpu_custom_call.1} parent=31 // pred_fallthru
        _
    $region32: #{tpu_custom_call.1} parent=5 // pred_fallthru
      _
    %p551 = scmp.le.s32.totalorder 2, %s9
    // Predicated region
    $region37: #{tpu_custom_call.1} parent=5 // pred_check
      %p552 = pneg %p551
    $region38: #{tpu_custom_call.1} parent=5 // pred_check_branch
      %554 = sbr.rel (%p552) target = $region40
    $region39: #{tpu_custom_call.1} parent=5 // pred_region
      %s555 = ssub.s32 %s9, 2
      // Predicated region
      $region41: #{tpu_custom_call.1} parent=39 // pred_check
        %p556 = pneg %p106
      $region42: #{tpu_custom_call.1} parent=39 // pred_check_branch
        %558 = sbr.rel (%p556) target = $region44
      $region43: #{tpu_custom_call.1} parent=39 // pred_region
        %s559 = smul.u32 16, %s15
        %p560 = scmp.lt.s32.totalorder %s559, 63
        %s561 = scalar_select %p560, %s559, 63
        %s562 = smul.addr %s561, 4
        %s563 = scalar_lea.vmem %s3, %s562
      $region44: #{tpu_custom_call.1} parent=39 // pred_fallthru
        _
    $region40: #{tpu_custom_call.1} parent=5 // pred_fallthru
      _
  $region6: #{tpu_custom_call.1} parent=0 // loop_footer
    %s13 = sadd.s32 1, %s9
  $region7: #{tpu_custom_call.1} parent=0 // loop_footer_branch
    %8 = sbr.rel target = $region3
  $region8: #{tpu_custom_call.1} parent=0 // loop_exit
    _

</llo_original>
